<compile_context>
chip_gen: v7x
topology: tpu7x:2x2x1
jax: 0.10.0
libtpu: 0.0.40
codegen_flags: <defaults>
</compile_context>

<pallas_src>
import functools

import numpy as np
import jax
import jax.numpy as jnp
from jax.experimental import pallas as pl
from jax.experimental.pallas import tpu as pltpu

C_NOISE = 3                  # channels of the diffused image (x_t[:, 0:3])
C_COND = 1                   # channels of the conditioning input_data
C_TOTAL = C_NOISE + C_COND   # 4
C_CONST = C_TOTAL            # index of the constant-1 channel (bias folding)
C_PAD = 8                    # sublane-aligned channel padding
TEMB_DIM = 16                # sinusoidal time-embedding width of the synthetic model


# ----------------------------- Pallas kernel ------------------------------- #
def ddim_loop_kernel(x0_ref, wt_ref, c1_ref, c2_ref, sig_ref, noise_ref, out_ref):
    """Fused DDIM reverse loop.  Grid axis 0 = sampling step (sequential).

    x0_ref   : (C_PAD, LANES)        initial packed state (resident in VMEM)
    wt_ref   : (steps, C_PAD, C_PAD) per-step 1x1-conv weight, time bias folded
                                     into column C_CONST (resident in VMEM)
    c1/c2/sig: (steps,) f32 in SMEM  per-step DDIM coefficients
    noise_ref: (1, C_PAD, LANES)     per-step epsilon_t (or a single resident
                                     zero block when eta == 0)
    out_ref  : (C_PAD, LANES)        resident state; holds x_0 after last step
    """
    s = pl.program_id(0)

    @pl.when(s == 0)
    def _init():
        out_ref[...] = x0_ref[...]

    x = out_ref[...]                                   # (C_PAD, LANES) current x_t
    w = wt_ref[s]                                      # (C_PAD, C_PAD)
    # eps_theta = W_s @ x  (1x1 conv over channels; temb arrives via the
    # constant-1 channel * column C_CONST of W_s).  Tiny matmul — kept on the
    # MXU for simplicity, it is far off the critical cost.
    eps_theta = jnp.dot(w, x, preferred_element_type=jnp.float32)

    c1 = c1_ref[s]                                     # scalars from SMEM
    c2 = c2_ref[s]
    sig = sig_ref[s]

    # x_{t-1} = sqrt(a_prev/a_t)*x_t + c2*eps_theta + sigma*eps
    upd = c1 * x + c2 * eps_theta + sig * noise_ref[0]

    # Rows >= C_NOISE (conditioning, constant-1, padding) pass through untouched
    # -> no host-side re-concat between steps.
    row = jax.lax.broadcasted_iota(jnp.int32, x.shape, 0)
    out_ref[...] = jnp.where(row < C_NOISE, upd, x)


@functools.partial(jax.jit, static_argnames=("steps", "per_step_noise"))
def _ddim_run(x0_pad, wt_all, c1, c2, sig, noise, *, steps, per_step_noise):
    lanes = x0_pad.shape[1]
    noise_map = (lambda s: (s, 0, 0)) if per_step_noise else (lambda s: (0, 0, 0))
    return pl.pallas_call(
        ddim_loop_kernel,
        out_shape=jax.ShapeDtypeStruct((C_PAD, lanes), jnp.float32),
        grid=(steps,),
        in_specs=[
            pl.BlockSpec((C_PAD, lanes), lambda s: (0, 0)),             # x0 (resident)
            pl.BlockSpec((steps, C_PAD, C_PAD), lambda s: (0, 0, 0)),   # weights (resident)
            pl.BlockSpec(memory_space=pltpu.MemorySpace.SMEM),          # c1   (steps,)
            pl.BlockSpec(memory_space=pltpu.MemorySpace.SMEM),          # c2   (steps,)
            pl.BlockSpec(memory_space=pltpu.MemorySpace.SMEM),          # sigma(steps,)
            pl.BlockSpec((1, C_PAD, lanes), noise_map),                 # epsilon_t
        ],
        out_specs=pl.BlockSpec((C_PAD, lanes), lambda s: (0, 0)),       # resident state
        compiler_params=pltpu.CompilerParams(
            dimension_semantics=("arbitrary",)),                        # sequential steps
    )(x0_pad, wt_all, c1, c2, sig, noise)


# --------------------------- synthetic eps-model --------------------------- #
def init_model_params(key):
    k1, k2, k3, k4 = jax.random.split(key, 4)
    return dict(
        w_conv=0.1 * jax.random.normal(k1, (C_NOISE, C_TOTAL), jnp.float32),
        b_conv=0.01 * jax.random.normal(k2, (C_NOISE,), jnp.float32),
        w_t=0.1 * jax.random.normal(k3, (TEMB_DIM, C_NOISE), jnp.float32),
        b_t=0.01 * jax.random.normal(k4, (C_NOISE,), jnp.float32),
    )


def timestep_embedding(t, dim=TEMB_DIM):
    half = dim // 2
    freqs = jnp.exp(-jnp.log(10000.0)
                    * jnp.arange(half, dtype=jnp.float32) / half)
    args = t.astype(jnp.float32)[:, None] * freqs[None, :]
    return jnp.concatenate([jnp.sin(args), jnp.cos(args)], axis=-1)   # (S, dim)


# ------------------------------- sampler ----------------------------------- #
class DDIMSamplerPallas:
    """JAX/Pallas port of the PyTorch DDIMSampler (only_return_x_0=True path)."""

    def __init__(self, params, beta, T):
        self.params = params
        self.T = T
        beta_t = np.linspace(beta[0], beta[1], T, dtype=np.float32)
        alpha_t = 1.0 - beta_t
        self.alpha_t_bar = np.cumprod(alpha_t).astype(np.float32)   # buffer, (T,)

    def _step_weights(self, t_arr):
        """(steps, C_PAD, C_PAD) weights with the per-step time bias folded into
        column C_CONST (the constant-1 channel)."""
        p = self.params
        temb = timestep_embedding(jnp.asarray(t_arr, jnp.float32))          # (S, 16)
        tbias = temb @ p["w_t"] + p["b_t"] + p["b_conv"]                    # (S, 3)
        steps = t_arr.shape[0]
        wt = jnp.zeros((steps, C_PAD, C_PAD), jnp.float32)
        wt = wt.at[:, :C_NOISE, :C_TOTAL].set(p["w_conv"][None])
        wt = wt.at[:, :C_NOISE, C_CONST].set(tbias)
        return wt

    def __call__(self, x_t, input_data, steps=1, method="linear", eta=0.0,
                 key=None):
        # ---- timestep schedule (host-side, matches reference) ----
        if method == "linear":
            a = self.T // steps
            time_steps = np.asarray(list(range(0, self.T, a)))
        elif method == "quadratic":
            time_steps = (np.linspace(0, np.sqrt(self.T * 0.8), steps) ** 2
                          ).astype(np.int64)
        else:
            raise NotImplementedError(
                f"sampling method {method} is not implemented!")
        time_steps = time_steps + 1
        time_steps_prev = np.concatenate([[0], time_steps[:-1]])

        B, _, H, W = x_t.shape
        HW = H * W
        lanes = B * HW

        # ---- per-step DDIM coefficients, in execution order s=0..steps-1
        #      (reference iterates i = steps-1 .. 0) ----
        order = list(reversed(range(steps)))
        t_arr = time_steps[order]
        tp_arr = time_steps_prev[order]
        alpha_t = self.alpha_t_bar[t_arr]
        alpha_prev = self.alpha_t_bar[tp_arr]
        sigma = eta * np.sqrt((1.0 - alpha_prev) / (1.0 - alpha_t)
                              * (1.0 - alpha_t / alpha_prev))
        c1 = np.sqrt(alpha_prev / alpha_t)
        c2 = (np.sqrt(1.0 - alpha_prev - sigma ** 2)
              - np.sqrt(alpha_prev * (1.0 - alpha_t) / alpha_t))

        wt_all = self._step_weights(t_arr)

        # ---- pack state: (C_PAD, B*HW); batch merged into the lane axis ----
        x_flat = jnp.transpose(
            x_t.reshape(B, C_NOISE, HW).astype(jnp.float32), (1, 0, 2)
        ).reshape(C_NOISE, lanes)
        cond_flat = jnp.transpose(
            input_data.reshape(B, C_COND, HW).astype(jnp.float32), (1, 0, 2)
        ).reshape(C_COND, lanes)
        x0_pad = jnp.zeros((C_PAD, lanes), jnp.float32)
        x0_pad = x0_pad.at[:C_NOISE].set(x_flat)
        x0_pad = x0_pad.at[C_NOISE:C_TOTAL].set(cond_flat)
        x0_pad = x0_pad.at[C_CONST].set(1.0)           # constant-1 channel (bias)

        # ---- noise: skipped (single resident zero block) when eta == 0 ----
        if key is None:
            key = jax.random.PRNGKey(0)
        if eta == 0.0:
            noise = jnp.zeros((1, C_PAD, lanes), jnp.float32)
            per_step_noise = False
        else:
            eps = jax.random.normal(
                key, (steps, C_NOISE, B, HW), jnp.float32).reshape(
                steps, C_NOISE, lanes)
            noise = jnp.zeros((steps, C_PAD, lanes), jnp.float32)
            noise = noise.at[:, :C_NOISE].set(eps)
            per_step_noise = True

        out_pad = _ddim_run(
            x0_pad, wt_all,
            jnp.asarray(c1, jnp.float32),
            jnp.asarray(c2, jnp.float32),
            jnp.asarray(sigma, jnp.float32),
            noise,
            steps=steps, per_step_noise=per_step_noise)

        x0 = out_pad[:C_NOISE].reshape(C_NOISE, B, HW)
        return jnp.transpose(x0, (1, 0, 2)).reshape(B, C_NOISE, H, W)


# --------------------------------- main ------------------------------------ #
if __name__ == "__main__":
    key = jax.random.PRNGKey(0)
    k_param, k_x, k_cond, k_sample = jax.random.split(key, 4)

    B, H, W = 2, 16, 16
    T, steps = 100, 5

    params = init_model_params(k_param)
    sampler = DDIMSamplerPallas(params, beta=(1e-4, 0.02), T=T)

    x_t = jax.random.normal(k_x, (B, C_NOISE, H, W), jnp.float32)
    input_data = jax.random.normal(k_cond, (B, C_COND, H, W), jnp.float32)

    # DDIM path (eta = 0): no noise DMA, fully fused loop.
    out = sampler(x_t, input_data, steps=steps, method="linear", eta=0.0,
                  key=k_sample)
    out = jax.block_until_ready(out)
    assert out.shape == (B, C_NOISE, H, W), out.shape
    assert bool(jnp.isfinite(out).all())

    # Stochastic path (eta > 0): per-step noise blocks pipelined into the kernel.
    out2 = sampler(x_t, input_data, steps=4, method="linear", eta=0.5,
                   key=k_sample)
    out2 = jax.block_until_ready(out2)
    assert out2.shape == (B, C_NOISE, H, W), out2.shape
    assert bool(jnp.isfinite(out2).all())

    print("KERNEL_OK")
</pallas_src>

<mosaic_0001>
module attributes {stable_mosaic.version = 11 : i64} {
  func.func @ddim_loop_kernel(%arg0: i32, %arg1: memref<8x512xf32, #tpu.memory_space<vmem>>, %arg2: memref<5x8x8xf32, #tpu.memory_space<vmem>>, %arg3: memref<5xf32, #tpu.memory_space<smem>>, %arg4: memref<5xf32, #tpu.memory_space<smem>>, %arg5: memref<5xf32, #tpu.memory_space<smem>>, %arg6: memref<1x8x512xf32, #tpu.memory_space<vmem>>, %arg7: memref<8x512xf32, #tpu.memory_space<vmem>>) attributes {dimension_semantics = [#tpu.dimension_semantics<arbitrary>], iteration_bounds = array<i64: 5>, scalar_prefetch = 0 : i64, scratch_operands = 0 : i64, tpu.core_type = #tpu.core_type<tc>, window_params = [{pipeline_mode = #tpu.pipeline_mode<synchronous>, transform_indices = @transform_0, window_bounds = array<i64: 8, 512>}, {pipeline_mode = #tpu.pipeline_mode<synchronous>, transform_indices = @transform_1, window_bounds = array<i64: 5, 8, 8>}, {transform_indices = @transform_2, window_bounds = array<i64: 5>}, {transform_indices = @transform_3, window_bounds = array<i64: 5>}, {transform_indices = @transform_4, window_bounds = array<i64: 5>}, {pipeline_mode = #tpu.pipeline_mode<synchronous>, transform_indices = @transform_5, window_bounds = array<i64: 1, 8, 512>}, {pipeline_mode = #tpu.pipeline_mode<synchronous>, transform_indices = @transform_6, window_bounds = array<i64: 8, 512>}]} {
    %c0_i32 = arith.constant 0 : i32
    %0 = arith.cmpi eq, %arg0, %c0_i32 : i32
    %1 = arith.extui %0 : i1 to i32
    %c0_i32_0 = arith.constant 0 : i32
    %2 = arith.cmpi ne, %1, %c0_i32_0 : i32
    scf.if %2 {
      %c0_9 = arith.constant 0 : index
      %c0_10 = arith.constant 0 : index
      %29 = vector.load %arg1[%c0_9, %c0_10] : memref<8x512xf32, #tpu.memory_space<vmem>>, vector<8x512xf32>
      %c0_11 = arith.constant 0 : index
      %c0_12 = arith.constant 0 : index
      %30 = vector.load %arg7[%c0_11, %c0_12] : memref<8x512xf32, #tpu.memory_space<vmem>>, vector<8x512xf32>
      tpu.vector_store %arg7[%c0_11, %c0_12], %29 {strides = array<i32>} : memref<8x512xf32, #tpu.memory_space<vmem>>, vector<8x512xf32>,
    } else {
    }
    %c0 = arith.constant 0 : index
    %c0_1 = arith.constant 0 : index
    %3 = vector.load %arg7[%c0, %c0_1] : memref<8x512xf32, #tpu.memory_space<vmem>>, vector<8x512xf32>
    %4 = arith.index_cast %arg0 : i32 to index
    %c0_2 = arith.constant 0 : index
    %c0_3 = arith.constant 0 : index
    %5 = vector.load %arg2[%4, %c0_2, %c0_3] : memref<5x8x8xf32, #tpu.memory_space<vmem>>, vector<1x8x8xf32>
    %6 = vector.shape_cast %5 : vector<1x8x8xf32> to vector<8x8xf32>
    %cst = arith.constant dense<0.000000e+00> : vector<8x512xf32>
    %7 = tpu.matmul %6, %3, %cst {dimension_numbers = #tpu.dot_dimension_numbers<[1], [0], [0], [1], [0, 0, 1, 1], [], []>} : vector<8x8xf32>, vector<8x512xf32>, vector<8x512xf32> -> vector<8x512xf32>
    %8 = arith.index_cast %arg0 : i32 to index
    %9 = memref.load %arg3[%8] : memref<5xf32, #tpu.memory_space<smem>>
    %10 = arith.index_cast %arg0 : i32 to index
    %11 = memref.load %arg4[%10] : memref<5xf32, #tpu.memory_space<smem>>
    %12 = arith.index_cast %arg0 : i32 to index
    %13 = memref.load %arg5[%12] : memref<5xf32, #tpu.memory_space<smem>>
    %14 = vector.broadcast %9 : f32 to vector<8x512xf32>
    %15 = arith.mulf %14, %3 : vector<8x512xf32>
    %16 = vector.broadcast %11 : f32 to vector<8x512xf32>
    %17 = arith.mulf %16, %7 : vector<8x512xf32>
    %18 = arith.addf %15, %17 : vector<8x512xf32>
    %c0_4 = arith.constant 0 : index
    %c0_5 = arith.constant 0 : index
    %c0_6 = arith.constant 0 : index
    %19 = vector.load %arg6[%c0_4, %c0_5, %c0_6] : memref<1x8x512xf32, #tpu.memory_space<vmem>>, vector<1x8x512xf32>
    %20 = vector.shape_cast %19 : vector<1x8x512xf32> to vector<8x512xf32>
    %21 = vector.broadcast %13 : f32 to vector<8x512xf32>
    %22 = arith.mulf %21, %20 : vector<8x512xf32>
    %23 = arith.addf %18, %22 : vector<8x512xf32>
    %24 = tpu.iota {dimensions = array<i32: 0>} : vector<8x512xi32>
    %c3_i32 = arith.constant 3 : i32
    %25 = vector.broadcast %c3_i32 : i32 to vector<8x512xi32>
    %26 = arith.cmpi slt, %24, %25 : vector<8x512xi32>
    %27 = arith.select %26, %23, %3 : vector<8x512xi1>, vector<8x512xf32>
    %c0_7 = arith.constant 0 : index
    %c0_8 = arith.constant 0 : index
    %28 = vector.load %arg7[%c0_7, %c0_8] : memref<8x512xf32, #tpu.memory_space<vmem>>, vector<8x512xf32>
    tpu.vector_store %arg7[%c0_7, %c0_8], %27 {strides = array<i32>} : memref<8x512xf32, #tpu.memory_space<vmem>>, vector<8x512xf32>,
    return
  }
  func.func @transform_0(%arg0: i32) -> (i32, i32) {
    %c0_i32 = arith.constant 0 : i32
    %c0_i32_0 = arith.constant 0 : i32
    %c0_i32_1 = arith.constant 0 : i32
    return %c0_i32, %c0_i32_0 : i32, i32
  }
  func.func @transform_1(%arg0: i32) -> (i32, i32, i32) {
    %c0_i32 = arith.constant 0 : i32
    %c0_i32_0 = arith.constant 0 : i32
    %c0_i32_1 = arith.constant 0 : i32
    %c0_i32_2 = arith.constant 0 : i32
    return %c0_i32, %c0_i32_0, %c0_i32_1 : i32, i32, i32
  }
  func.func @transform_2(%arg0: i32) -> i32 {
    %c0_i32 = arith.constant 0 : i32
    %c0_i32_0 = arith.constant 0 : i32
    return %c0_i32 : i32
  }
  func.func @transform_3(%arg0: i32) -> i32 {
    %c0_i32 = arith.constant 0 : i32
    %c0_i32_0 = arith.constant 0 : i32
    return %c0_i32 : i32
  }
  func.func @transform_4(%arg0: i32) -> i32 {
    %c0_i32 = arith.constant 0 : i32
    %c0_i32_0 = arith.constant 0 : i32
    return %c0_i32 : i32
  }
  func.func @transform_5(%arg0: i32) -> (i32, i32, i32) {
    %c0_i32 = arith.constant 0 : i32
    %c0_i32_0 = arith.constant 0 : i32
    %c0_i32_1 = arith.constant 0 : i32
    %c0_i32_2 = arith.constant 0 : i32
    return %c0_i32, %c0_i32_0, %c0_i32_1 : i32, i32, i32
  }
  func.func @transform_6(%arg0: i32) -> (i32, i32) {
    %c0_i32 = arith.constant 0 : i32
    %c0_i32_0 = arith.constant 0 : i32
    %c0_i32_1 = arith.constant 0 : i32
    return %c0_i32, %c0_i32_0 : i32, i32
  }
}

</mosaic_0001>

<llo_original>
// kernel: _ddim_run.1
$region0: #{_ddim_run.1}
  #allocation0 [shape = 'u32[]', space=smem, size = 0x4, offset = 0x4, fixed_abs, tag = 'smem constant byte address 0x4 - core index']
  #allocation1 [shape = 'u32[144,128]{1,0:T(1,128)}', space=vmem, size = 0x12000, scoped, tag = 'internal scratch']
  %s0 = inlined_call_operand.hbm [shape: f32[8,512], index: 0, kind: input, shape index: {}]
  %s1 = inlined_call_operand.hbm [shape: f32[5,8,8], index: 1, kind: input, shape index: {}]
  %s2 = inlined_call_operand.vmem [shape: f32[5], index: 2, kind: input, shape index: {}]
  %s3 = inlined_call_operand.vmem [shape: f32[5], index: 3, kind: input, shape index: {}]
  %s4 = inlined_call_operand.vmem [shape: f32[5], index: 4, kind: input, shape index: {}]
  %s5 = inlined_call_operand.hbm [shape: f32[1,8,512], index: 5, kind: input, shape index: {}]
  %s6 = inlined_call_operand.hbm [shape: f32[8,512], index: 6, kind: output, shape index: {}]
  %s7 = sld [smem:[#allocation0]]
  $region85: #{_ddim_run.1} parent=0
    _
  %s9 = ssub.s32 1, %s7
  %s10 = scalar_select 0, %s9, %s7
  $region1: #{_ddim_run.1} parent=0
    #allocation2 [shape = 'u8[16384]{0}', space=vmem, size = 0x4000, scoped, tag = 'input window, operand 0, single buffered']
    #allocation3 [shape = 's32[2]{0}', space=sflag, size = 0x8, scoped, tag = 'scoped memory for _ddim_run.1']
    #allocation4 [shape = 's32[2]{0}', space=sflag, size = 0x8, scoped, tag = 'scoped memory for _ddim_run.1']
    #allocation5 [shape = 's32[2]{0}', space=sflag, size = 0x8, scoped, tag = 'scoped memory for _ddim_run.1']
    #allocation6 [shape = 'u8[20480]{0}', space=vmem, size = 0x5000, scoped, tag = 'input window, operand 1, single buffered']
    #allocation7 [shape = 's32[1]{0}', space=sflag, size = 0x4, scoped, tag = 'scoped memory for _ddim_run.1']
    #allocation8 [shape = 'u8[512]{0}', space=smem, size = 0x200, scoped, tag = 'input window, operand 2, single buffered']
    #allocation9 [shape = 'u8[512]{0}', space=smem, size = 0x200, scoped, tag = 'input window, operand 3, single buffered']
    #allocation10 [shape = 's32[1]{0}', space=sflag, size = 0x4, scoped, tag = 'scoped memory for _ddim_run.1']
    #allocation11 [shape = 'u8[512]{0}', space=smem, size = 0x200, scoped, tag = 'input window, operand 4, single buffered']
    #allocation12 [shape = 'u8[16384]{0}', space=vmem, size = 0x4000, scoped, tag = 'input window, operand 5, single buffered']
    #allocation13 [shape = 'u8[16384]{0}', space=vmem, size = 0x4000, scoped, tag = 'output window, operand 0, single buffered']
    %11 = vsyncpa [#allocation3], 0
    %12 = vsyncpa [#allocation7], 0
    %13 = vsyncpa [#allocation5], 0
    %14 = vsyncpa [#allocation10], 0
    %15 = vsyncpa [#allocation4], 0
    loop: start=0, step=1, limit=7
    $region2: #{_ddim_run.1} parent=1 // loop_pre_header
      _
    $region3: #{_ddim_run.1} parent=1 // loop_header
      %s17 = sphi 0, %s21
      %p18 = scmp.ge.s32.totalorder %s17, 7
      %s25 = sphi 0, %s25
      %s27 = sphi 0, %s25
      %s28 = sphi 0, %s27
      %s42 = sphi 0, %s28
      %s46 = sphi 0, %s46
      %s48 = sphi 0, %s46
      %s49 = sphi 0, %s48
      %s63 = sphi 0, %s49
      %s67 = sphi 0, %s67
      %s69 = sphi 0, %s67
      %s70 = sphi 0, %s69
      %s84 = sphi 0, %s70
      %s88 = sphi 0, %s88
      %s90 = sphi 0, %s88
      %s91 = sphi 0, %s90
      %s105 = sphi 0, %s91
      %s109 = sphi 0, %s109
      %s111 = sphi 0, %s109
      %s112 = sphi 0, %s111
      %s126 = sphi 0, %s112
      %s130 = sphi 0, %s130
      %s132 = sphi 0, %s130
      %s133 = sphi 0, %s132
      %s147 = sphi 0, %s133
      %s151 = sphi 0, %s151
      %s153 = sphi 0, %s151
      %s154 = sphi 0, %s153
      %s168 = sphi 0, %s154
    $region4: #{_ddim_run.1} parent=1 // loop_header_branch
      %20 = sbr.rel (%p18) target = $region8
    $region5: #{_ddim_run.1} parent=1 // loop_body
      %s22 = ssub.s32 %s17, 1
      %s23 = ssub.s32 %s17, 2
      %s24 = sadd.s32 %s17, 1
      %s26 = sadd.s32 %s25, 1
      %p29 = scmp.eq.s32.totalorder %s17, 4
      %p30 = scmp.ne.s32.totalorder %s25, %s27
      %p31 = scmp.eq.s32.totalorder %s17, 0
      %p32 = por %p30, %p31
      %p33 = scmp.ne.s32.totalorder %s25, %s27
      %p34 = scmp.eq.s32.totalorder %s22, 4
      %p35 = por %p33, %p34
      %p36 = scmp.ne.s32.totalorder %s27, %s28
      %p37 = scmp.eq.s32.totalorder %s22, 0
      %p38 = por %p36, %p37
      %p39 = scmp.ne.s32.totalorder %s27, %s28
      %p40 = scmp.eq.s32.totalorder %s23, 4
      %p41 = por %p39, %p40
      %p43 = scmp.ne.s32.totalorder %s28, %s42
      %p44 = scmp.eq.s32.totalorder %s23, 0
      %p45 = por %p43, %p44
      %s47 = sadd.s32 %s46, 1
      %p50 = scmp.eq.s32.totalorder %s17, 4
      %p51 = scmp.ne.s32.totalorder %s46, %s48
      %p52 = scmp.eq.s32.totalorder %s17, 0
      %p53 = por %p51, %p52
      %p54 = scmp.ne.s32.totalorder %s46, %s48
      %p55 = scmp.eq.s32.totalorder %s22, 4
      %p56 = por %p54, %p55
      %p57 = scmp.ne.s32.totalorder %s48, %s49
      %p58 = scmp.eq.s32.totalorder %s22, 0
      %p59 = por %p57, %p58
      %p60 = scmp.ne.s32.totalorder %s48, %s49
      %p61 = scmp.eq.s32.totalorder %s23, 4
      %p62 = por %p60, %p61
      %p64 = scmp.ne.s32.totalorder %s49, %s63
      %p65 = scmp.eq.s32.totalorder %s23, 0
      %p66 = por %p64, %p65
      %s68 = sadd.s32 %s67, 1
      %p71 = scmp.eq.s32.totalorder %s17, 4
      %p72 = scmp.ne.s32.totalorder %s67, %s69
      %p73 = scmp.eq.s32.totalorder %s17, 0
      %p74 = por %p72, %p73
      %p75 = scmp.ne.s32.totalorder %s67, %s69
      %p76 = scmp.eq.s32.totalorder %s22, 4
      %p77 = por %p75, %p76
      %p78 = scmp.ne.s32.totalorder %s69, %s70
      %p79 = scmp.eq.s32.totalorder %s22, 0
      %p80 = por %p78, %p79
      %p81 = scmp.ne.s32.totalorder %s69, %s70
      %p82 = scmp.eq.s32.totalorder %s23, 4
      %p83 = por %p81, %p82
      %p85 = scmp.ne.s32.totalorder %s70, %s84
      %p86 = scmp.eq.s32.totalorder %s23, 0
      %p87 = por %p85, %p86
      %s89 = sadd.s32 %s88, 1
      %p92 = scmp.eq.s32.totalorder %s17, 4
      %p93 = scmp.ne.s32.totalorder %s88, %s90
      %p94 = scmp.eq.s32.totalorder %s17, 0
      %p95 = por %p93, %p94
      %p96 = scmp.ne.s32.totalorder %s88, %s90
      %p97 = scmp.eq.s32.totalorder %s22, 4
      %p98 = por %p96, %p97
      %p99 = scmp.ne.s32.totalorder %s90, %s91
      %p100 = scmp.eq.s32.totalorder %s22, 0
      %p101 = por %p99, %p100
      %p102 = scmp.ne.s32.totalorder %s90, %s91
      %p103 = scmp.eq.s32.totalorder %s23, 4
      %p104 = por %p102, %p103
      %p106 = scmp.ne.s32.totalorder %s91, %s105
      %p107 = scmp.eq.s32.totalorder %s23, 0
      %p108 = por %p106, %p107
      %s110 = sadd.s32 %s109, 1
      %p113 = scmp.eq.s32.totalorder %s17, 4
      %p114 = scmp.ne.s32.totalorder %s109, %s111
      %p115 = scmp.eq.s32.totalorder %s17, 0
      %p116 = por %p114, %p115
      %p117 = scmp.ne.s32.totalorder %s109, %s111
      %p118 = scmp.eq.s32.totalorder %s22, 4
      %p119 = por %p117, %p118
      %p120 = scmp.ne.s32.totalorder %s111, %s112
      %p121 = scmp.eq.s32.totalorder %s22, 0
      %p122 = por %p120, %p121
      %p123 = scmp.ne.s32.totalorder %s111, %s112
      %p124 = scmp.eq.s32.totalorder %s23, 4
      %p125 = por %p123, %p124
      %p127 = scmp.ne.s32.totalorder %s112, %s126
      %p128 = scmp.eq.s32.totalorder %s23, 0
      %p129 = por %p127, %p128
      %s131 = sadd.s32 %s130, 1
      %p134 = scmp.eq.s32.totalorder %s17, 4
      %p135 = scmp.ne.s32.totalorder %s130, %s132
      %p136 = scmp.eq.s32.totalorder %s17, 0
      %p137 = por %p135, %p136
      %p138 = scmp.ne.s32.totalorder %s130, %s132
      %p139 = scmp.eq.s32.totalorder %s22, 4
      %p140 = por %p138, %p139
      %p141 = scmp.ne.s32.totalorder %s132, %s133
      %p142 = scmp.eq.s32.totalorder %s22, 0
      %p143 = por %p141, %p142
      %p144 = scmp.ne.s32.totalorder %s132, %s133
      %p145 = scmp.eq.s32.totalorder %s23, 4
      %p146 = por %p144, %p145
      %p148 = scmp.ne.s32.totalorder %s133, %s147
      %p149 = scmp.eq.s32.totalorder %s23, 0
      %p150 = por %p148, %p149
      %s152 = sadd.s32 %s151, 1
      %p155 = scmp.eq.s32.totalorder %s17, 4
      %p156 = scmp.ne.s32.totalorder %s151, %s153
      %p157 = scmp.eq.s32.totalorder %s17, 0
      %p158 = por %p156, %p157
      %p159 = scmp.ne.s32.totalorder %s151, %s153
      %p160 = scmp.eq.s32.totalorder %s22, 4
      %p161 = por %p159, %p160
      %p162 = scmp.ne.s32.totalorder %s153, %s154
      %p163 = scmp.eq.s32.totalorder %s22, 0
      %p164 = por %p162, %p163
      %p165 = scmp.ne.s32.totalorder %s153, %s154
      %p166 = scmp.eq.s32.totalorder %s23, 4
      %p167 = por %p165, %p166
      %p169 = scmp.ne.s32.totalorder %s154, %s168
      %p170 = scmp.eq.s32.totalorder %s23, 0
      %p171 = por %p169, %p170
      %p172 = scmp.le.s32.totalorder 1, %s17
      %p173 = scmp.lt.s32.totalorder %s17, 6
      %p174 = pnand %p172, %p173
      %p175 = pneg %p174
      // Predicated region
      $region9: #{_ddim_run.1} parent=5 // pred_check
        _
      $region10: #{_ddim_run.1} parent=5 // pred_check_branch
        %177 = sbr.rel (%p174) target = $region12
      $region11: #{_ddim_run.1} parent=5 // pred_region
        %s178 = ssub.s32 %s17, 1
        // Predicated region
        $region13: #{_ddim_run.1} parent=11 // pred_check
          %p179 = pneg %p38
        $region14: #{_ddim_run.1} parent=11 // pred_check_branch
          %181 = sbr.rel (%p179) target = $region16
        $region15: #{_ddim_run.1} parent=11 // pred_region
          %s183 = ssub.s32 512, 512
          %184 = vsyncadd [#allocation3], %s183
          %s186 = sshll.u32 [#allocation2], 4
          %s187 = int_to_ptr.vmem [resolvable:$true] %s186
          %189 = dma.hbm_to_vmem [thread:$0]  %s0, 512, %s187, [#allocation3]
        $region16: #{_ddim_run.1} parent=11 // pred_fallthru
          _
        // Predicated region
        $region17: #{_ddim_run.1} parent=11 // pred_check
          %p190 = pneg %p59
        $region18: #{_ddim_run.1} parent=11 // pred_check_branch
          %192 = sbr.rel (%p190) target = $region20
        $region19: #{_ddim_run.1} parent=11 // pred_region
          %s194 = ssub.s32 640, 640
          %195 = vsyncadd [#allocation7], %s194
          %s196 = sshll.u32 [#allocation6], 4
          %s197 = int_to_ptr.vmem [resolvable:$true] %s196
          %202 = dma.hbm_to_vmem [thread:$0]  %s1, 640, %s197, [#allocation7], 128, 128, 8
        $region20: #{_ddim_run.1} parent=11 // pred_fallthru
          _
        // Predicated region
        $region21: #{_ddim_run.1} parent=11 // pred_check
          %p203 = pneg %p80
        $region22: #{_ddim_run.1} parent=11 // pred_check_branch
          %205 = sbr.rel (%p203) target = $region24
        $region23: #{_ddim_run.1} parent=11 // pred_region
          %s207 = ssub.s32 16, 16
          %208 = vsyncadd [#allocation5], %s207
          %s210 = sshll.u32 %s2, 4
          %s211 = int_to_ptr.vmem [resolvable:$true] %s210
          %213 = dma.vmem_to_smem %s211, 16, [#allocation8], [#allocation5]
        $region24: #{_ddim_run.1} parent=11 // pred_fallthru
          _
        // Predicated region
        $region25: #{_ddim_run.1} parent=11 // pred_check
          %p214 = pneg %p101
        $region26: #{_ddim_run.1} parent=11 // pred_check_branch
          %216 = sbr.rel (%p214) target = $region28
        $region27: #{_ddim_run.1} parent=11 // pred_region
          %s218 = ssub.s32 16, 16
          %219 = vsyncadd [#allocation10], %s218
          %s221 = sshll.u32 %s3, 4
          %s222 = int_to_ptr.vmem [resolvable:$true] %s221
          %224 = dma.vmem_to_smem %s222, 16, [#allocation9], [#allocation10]
        $region28: #{_ddim_run.1} parent=11 // pred_fallthru
          _
        // Predicated region
        $region29: #{_ddim_run.1} parent=11 // pred_check
          %p225 = pneg %p122
        $region30: #{_ddim_run.1} parent=11 // pred_check_branch
          %227 = sbr.rel (%p225) target = $region32
        $region31: #{_ddim_run.1} parent=11 // pred_region
          %s229 = ssub.s32 16, 16
          %230 = vsyncadd [#allocation10], %s229
          %s232 = sshll.u32 %s4, 4
          %s233 = int_to_ptr.vmem [resolvable:$true] %s232
          %235 = dma.vmem_to_smem %s233, 16, [#allocation11], [#allocation10]
        $region32: #{_ddim_run.1} parent=11 // pred_fallthru
          _
        // Predicated region
        $region33: #{_ddim_run.1} parent=11 // pred_check
          %p236 = pneg %p143
        $region34: #{_ddim_run.1} parent=11 // pred_check_branch
          %238 = sbr.rel (%p236) target = $region36
        $region35: #{_ddim_run.1} parent=11 // pred_region
          %s240 = ssub.s32 512, 512
          %241 = vsyncadd [#allocation7], %s240
          %s243 = sshll.u32 [#allocation12], 4
          %s244 = int_to_ptr.vmem [resolvable:$true] %s243
          %246 = dma.hbm_to_vmem [thread:$0]  %s5, 512, %s244, [#allocation7]
        $region36: #{_ddim_run.1} parent=11 // pred_fallthru
          _
      $region12: #{_ddim_run.1} parent=5 // pred_fallthru
        _
      %p247 = scmp.lt.s32.totalorder %s17, 5
      // Predicated region
      $region37: #{_ddim_run.1} parent=5 // pred_check
        %p248 = pneg %p247
      $region38: #{_ddim_run.1} parent=5 // pred_check_branch
        %250 = sbr.rel (%p248) target = $region40
      $region39: #{_ddim_run.1} parent=5 // pred_region
        _
      $region40: #{_ddim_run.1} parent=5 // pred_fallthru
        _
      %p251 = scmp.le.s32.totalorder 1, %s17
      %p252 = scmp.lt.s32.totalorder %s17, 6
      %p253 = pnand %p251, %p252
      %p254 = pneg %p253
      // Predicated region
      $region41: #{_ddim_run.1} parent=5 // pred_check
        _
      $region42: #{_ddim_run.1} parent=5 // pred_check_branch
        %256 = sbr.rel (%p253) target = $region44
      $region43: #{_ddim_run.1} parent=5 // pred_region
        %s257 = ssub.s32 %s17, 1
        // Predicated region
        $region45: #{_ddim_run.1} parent=43 // pred_check
          %p258 = pneg %p38
        $region46: #{_ddim_run.1} parent=43 // pred_check_branch
          %260 = sbr.rel (%p258) target = $region48
        $region47: #{_ddim_run.1} parent=43 // pred_region
          %261 = dma.done [#allocation3], 512
        $region48: #{_ddim_run.1} parent=43 // pred_fallthru
          _
        // Predicated region
        $region49: #{_ddim_run.1} parent=43 // pred_check
          %p262 = pneg %p59
        $region50: #{_ddim_run.1} parent=43 // pred_check_branch
          %264 = sbr.rel (%p262) target = $region52
        $region51: #{_ddim_run.1} parent=43 // pred_region
          %265 = dma.done [#allocation7], 640
        $region52: #{_ddim_run.1} parent=43 // pred_fallthru
          _
        // Predicated region
        $region53: #{_ddim_run.1} parent=43 // pred_check
          %p266 = pneg %p80
        $region54: #{_ddim_run.1} parent=43 // pred_check_branch
          %268 = sbr.rel (%p266) target = $region56
        $region55: #{_ddim_run.1} parent=43 // pred_region
          %269 = dma.done [#allocation5], 16
        $region56: #{_ddim_run.1} parent=43 // pred_fallthru
          _
        // Predicated region
        $region57: #{_ddim_run.1} parent=43 // pred_check
          %p270 = pneg %p101
        $region58: #{_ddim_run.1} parent=43 // pred_check_branch
          %272 = sbr.rel (%p270) target = $region60
        $region59: #{_ddim_run.1} parent=43 // pred_region
          %273 = dma.done [#allocation10], 16
        $region60: #{_ddim_run.1} parent=43 // pred_fallthru
          _
        // Predicated region
        $region61: #{_ddim_run.1} parent=43 // pred_check
          %p274 = pneg %p122
        $region62: #{_ddim_run.1} parent=43 // pred_check_branch
          %276 = sbr.rel (%p274) target = $region64
        $region63: #{_ddim_run.1} parent=43 // pred_region
          %277 = dma.done [#allocation10], 16
        $region64: #{_ddim_run.1} parent=43 // pred_fallthru
          _
        // Predicated region
        $region65: #{_ddim_run.1} parent=43 // pred_check
          %p278 = pneg %p143
        $region66: #{_ddim_run.1} parent=43 // pred_check_branch
          %280 = sbr.rel (%p278) target = $region68
        $region67: #{_ddim_run.1} parent=43 // pred_region
          %281 = dma.done [#allocation7], 512
        $region68: #{_ddim_run.1} parent=43 // pred_fallthru
          _
        %282 = sfence
        %p283 = pneg %p38
        %p284 = pneg %p35
        %p285 = pneg %p59
        %p286 = pneg %p56
        %p287 = pneg %p80
        %p288 = pneg %p77
        %p289 = pneg %p101
        %p290 = pneg %p98
        %p291 = pneg %p122
        %p292 = pneg %p119
        %p293 = pneg %p143
        %p294 = pneg %p140
        %p295 = pneg %p164
        %p296 = pneg %p161
        %p297 = scmp.eq.s32.totalorder %s22, 0
        // Predicated region
        $region69: #{_ddim_run.1} parent=43 // pred_check
          %p298 = pneg %p297
        $region70: #{_ddim_run.1} parent=43 // pred_check_branch
          %300 = sbr.rel (%p298) target = $region72
        $region71: #{_ddim_run.1} parent=43 // pred_region
          %v301 = vld [vmem:[#allocation2] sm:$0xff]
          %v302 = vld [vmem:[#allocation2 + $0x8] sm:$0xff]
          %v303 = vld [vmem:[#allocation2 + $0x10] sm:$0xff]
          %v304 = vld [vmem:[#allocation2 + $0x18] sm:$0xff]
          %305 = vst [vmem:[#allocation13] sm:$0xff] %v301
          %306 = vst [vmem:[#allocation13 + $0x8] sm:$0xff] %v302
          %307 = vst [vmem:[#allocation13 + $0x10] sm:$0xff] %v303
          %308 = vst [vmem:[#allocation13 + $0x18] sm:$0xff] %v304
        $region72: #{_ddim_run.1} parent=43 // pred_fallthru
          _
        %v309 = vld [vmem:[#allocation13] sm:$0xff]
        %v310 = vld [vmem:[#allocation13 + $0x8] sm:$0xff]
        %v311 = vld [vmem:[#allocation13 + $0x10] sm:$0xff]
        %v312 = vld [vmem:[#allocation13 + $0x18] sm:$0xff]
        %s313 = smul.u32 %s22, 8
        %s314 = scalar_lea.vmem [#allocation6], %s313
        %v315 = vld [vmem:[%s314] sm:$0xff]
        %vm316 = vcmask 64512
        %v318 = vsel %vm316, %v315, 0
        %320 = vmatprep.subr.mxu0 %v310
        %321 = vmatpush1.msra.mxu0 %v309
        %322 = vmatprep.subr.mxu0 0.0
        %323 = vmatpush1.msra.mxu0 0.0
        %324 = vmatprep.subr.mxu0 0.0
        %325 = vmatpush1.msra.mxu0 0.0
        %326 = vmatprep.subr.mxu0 0.0
        %327 = vmatpush1.msra.mxu0 0.0
        %328 = vmatprep.subr.mxu0 0.0
        %329 = vmatpush1.msra.mxu0 0.0
        %330 = vmatprep.subr.mxu0 0.0
        %331 = vmatpush1.msra.mxu0 0.0
        %332 = vmatprep.subr.mxu0 0.0
        %333 = vmatpush1.msra.mxu0 0.0
        %334 = vmatprep.subr.mxu0 0.0
        %335 = vmatpush1.msra.mxu0 0.0
        %336 = vmatprep.subr.mxu0 0.0
        %337 = vmatpush1.msra.mxu0 0.0
        %338 = vmatprep.subr.mxu0 0.0
        %339 = vmatpush1.msra.mxu0 0.0
        %340 = vmatprep.subr.mxu0 0.0
        %341 = vmatpush1.msra.mxu0 0.0
        %342 = vmatprep.subr.mxu0 0.0
        %343 = vmatpush1.msra.mxu0 0.0
        %344 = vmatprep.subr.mxu0 0.0
        %345 = vmatpush1.msra.mxu0 0.0
        %346 = vmatprep.subr.mxu0 0.0
        %347 = vmatpush1.msra.mxu0 0.0
        %348 = vmatprep.subr.mxu0 0.0
        %349 = vmatpush1.msra.mxu0 0.0
        %350 = vmatprep.subr.mxu0 0.0
        %351 = vmatpush1.msra.mxu0 0.0
        %352 = vmatprep.subr.mxu0 0.0
        %353 = vmatpush1.msra.mxu0 0.0
        %354 = vmatprep.subr.mxu0 0.0
        %355 = vmatpush1.msra.mxu0 0.0
        %356 = vmatprep.subr.mxu0 0.0
        %357 = vmatpush1.msra.mxu0 0.0
        %358 = vmatprep.subr.mxu0 0.0
        %359 = vmatpush1.msra.mxu0 0.0
        %360 = vmatprep.subr.mxu0 0.0
        %361 = vmatpush1.msra.mxu0 0.0
        %362 = vmatprep.subr.mxu0 0.0
        %363 = vmatpush1.msra.mxu0 0.0
        %364 = vmatprep.subr.mxu0 0.0
        %365 = vmatpush1.msra.mxu0 0.0
        %366 = vmatprep.subr.mxu0 0.0
        %367 = vmatpush1.msra.mxu0 0.0
        %368 = vmatprep.subr.mxu0 0.0
        %369 = vmatpush1.msra.mxu0 0.0
        %370 = vmatprep.subr.mxu0 0.0
        %371 = vmatpush1.msra.mxu0 0.0
        %372 = vmatprep.subr.mxu0 0.0
        %373 = vmatpush1.msra.mxu0 0.0
        %374 = vmatprep.subr.mxu0 0.0
        %375 = vmatpush1.msra.mxu0 0.0
        %376 = vmatprep.subr.mxu0 0.0
        %377 = vmatpush1.msra.mxu0 0.0
        %378 = vmatprep.subr.mxu0 0.0
        %379 = vmatpush1.msra.mxu0 0.0
        %380 = vmatprep.subr.mxu0 0.0
        %381 = vmatpush1.msra.mxu0 0.0
        %382 = vmatprep.subr.mxu0 0.0
        %383 = vmatpush1.msra.mxu0 0.0
        %384 = vmatprep.mubr.f32.mxu0 0.0
        %385 = vmatmul.mubr.f32.gmra.mrb[0].mxu0 %v318
        %v386 = vpop.f32.mrb[0].mxu0
        %v387 = vadd.f32 0.0, %v386
        %v388 = vpop.f32.mrb[0].mxu0
        %v389 = vadd.f32 0.0, %v388
        %390 = vdwg.mxu0
        %391 = vmatprep.subr.mxu0 %v312
        %392 = vmatpush1.msra.mxu0 %v311
        %393 = vmatprep.subr.mxu0 0.0
        %394 = vmatpush1.msra.mxu0 0.0
        %395 = vmatprep.subr.mxu0 0.0
        %396 = vmatpush1.msra.mxu0 0.0
        %397 = vmatprep.subr.mxu0 0.0
        %398 = vmatpush1.msra.mxu0 0.0
        %399 = vmatprep.subr.mxu0 0.0
        %400 = vmatpush1.msra.mxu0 0.0
        %401 = vmatprep.subr.mxu0 0.0
        %402 = vmatpush1.msra.mxu0 0.0
        %403 = vmatprep.subr.mxu0 0.0
        %404 = vmatpush1.msra.mxu0 0.0
        %405 = vmatprep.subr.mxu0 0.0
        %406 = vmatpush1.msra.mxu0 0.0
        %407 = vmatprep.subr.mxu0 0.0
        %408 = vmatpush1.msra.mxu0 0.0
        %409 = vmatprep.subr.mxu0 0.0
        %410 = vmatpush1.msra.mxu0 0.0
        %411 = vmatprep.subr.mxu0 0.0
        %412 = vmatpush1.msra.mxu0 0.0
        %413 = vmatprep.subr.mxu0 0.0
        %414 = vmatpush1.msra.mxu0 0.0
        %415 = vmatprep.subr.mxu0 0.0
        %416 = vmatpush1.msra.mxu0 0.0
        %417 = vmatprep.subr.mxu0 0.0
        %418 = vmatpush1.msra.mxu0 0.0
        %419 = vmatprep.subr.mxu0 0.0
        %420 = vmatpush1.msra.mxu0 0.0
        %421 = vmatprep.subr.mxu0 0.0
        %422 = vmatpush1.msra.mxu0 0.0
        %423 = vmatprep.subr.mxu0 0.0
        %424 = vmatpush1.msra.mxu0 0.0
        %425 = vmatprep.subr.mxu0 0.0
        %426 = vmatpush1.msra.mxu0 0.0
        %427 = vmatprep.subr.mxu0 0.0
        %428 = vmatpush1.msra.mxu0 0.0
        %429 = vmatprep.subr.mxu0 0.0
        %430 = vmatpush1.msra.mxu0 0.0
        %431 = vmatprep.subr.mxu0 0.0
        %432 = vmatpush1.msra.mxu0 0.0
        %433 = vmatprep.subr.mxu0 0.0
        %434 = vmatpush1.msra.mxu0 0.0
        %435 = vmatprep.subr.mxu0 0.0
        %436 = vmatpush1.msra.mxu0 0.0
        %437 = vmatprep.subr.mxu0 0.0
        %438 = vmatpush1.msra.mxu0 0.0
        %439 = vmatprep.subr.mxu0 0.0
        %440 = vmatpush1.msra.mxu0 0.0
        %441 = vmatprep.subr.mxu0 0.0
        %442 = vmatpush1.msra.mxu0 0.0
        %443 = vmatprep.subr.mxu0 0.0
        %444 = vmatpush1.msra.mxu0 0.0
        %445 = vmatprep.subr.mxu0 0.0
        %446 = vmatpush1.msra.mxu0 0.0
        %447 = vmatprep.subr.mxu0 0.0
        %448 = vmatpush1.msra.mxu0 0.0
        %449 = vmatprep.subr.mxu0 0.0
        %450 = vmatpush1.msra.mxu0 0.0
        %451 = vmatprep.subr.mxu0 0.0
        %452 = vmatpush1.msra.mxu0 0.0
        %453 = vmatprep.subr.mxu0 0.0
        %454 = vmatpush1.msra.mxu0 0.0
        %455 = vmatprep.mubr.f32.mxu0 0.0
        %456 = vmatmul.mubr.f32.gmra.mrb[0].mxu0 %v318
        %v457 = vpop.f32.mrb[0].mxu0
        %v458 = vadd.f32 0.0, %v457
        %v459 = vpop.f32.mrb[0].mxu0
        %v460 = vadd.f32 0.0, %v459
        %461 = vdwg.mxu0
        %s462 = sld [smem:[#allocation8 + %s22]]
        %s463 = sld [smem:[#allocation9 + %s22]]
        %s464 = sld [smem:[#allocation11 + %s22]]
        %v465 = vstv %s462
        %v466 = vmul.f32 %v465, %v309
        %v467 = vmul.f32 %v465, %v310
        %v468 = vmul.f32 %v465, %v311
        %v469 = vmul.f32 %v465, %v312
        %v470 = vstv %s463
        %v471 = vmul.f32 %v470, %v387
        %v472 = vmul.f32 %v470, %v389
        %v473 = vmul.f32 %v470, %v458
        %v474 = vmul.f32 %v470, %v460
        %v475 = vadd.f32 %v466, %v471
        %v476 = vadd.f32 %v467, %v472
        %v477 = vadd.f32 %v468, %v473
        %v478 = vadd.f32 %v469, %v474
        %v479 = vld [vmem:[#allocation12] sm:$0xff]
        %v480 = vld [vmem:[#allocation12 + $0x8] sm:$0xff]
        %v481 = vld [vmem:[#allocation12 + $0x10] sm:$0xff]
        %v482 = vld [vmem:[#allocation12 + $0x18] sm:$0xff]
        %v483 = vstv %s464
        %v484 = vmul.f32 %v483, %v479
        %v485 = vmul.f32 %v483, %v480
        %v486 = vmul.f32 %v483, %v481
        %v487 = vmul.f32 %v483, %v482
        %v488 = vadd.f32 %v475, %v484
        %v489 = vadd.f32 %v476, %v485
        %v490 = vadd.f32 %v477, %v486
        %v491 = vadd.f32 %v478, %v487
        %v492 = vlaneseq
        %v493 = vshrl.u32 %v492, 7
        %vm494 = vcmp.lt.s32.totalorder %v493, 3
        %v495 = vsel %vm494, %v488, %v309
        %v496 = vsel %vm494, %v489, %v310
        %v497 = vsel %vm494, %v490, %v311
        %v498 = vsel %vm494, %v491, %v312
        %499 = vst [vmem:[#allocation13] sm:$0xff] %v495
        %500 = vst [vmem:[#allocation13 + $0x8] sm:$0xff] %v496
        %501 = vst [vmem:[#allocation13 + $0x10] sm:$0xff] %v497
        %502 = vst [vmem:[#allocation13 + $0x18] sm:$0xff] %v498
        // Predicated region
        $region73: #{_ddim_run.1} parent=43 // pred_check
          %p503 = pneg %p161
        $region74: #{_ddim_run.1} parent=43 // pred_check_branch
          %505 = sbr.rel (%p503) target = $region76
        $region75: #{_ddim_run.1} parent=43 // pred_region
          %s507 = ssub.s32 512, 512
          %508 = vsyncadd [#allocation4], %s507
          %s510 = sshll.u32 [#allocation13], 4
          %s511 = int_to_ptr.vmem [resolvable:$true] %s510
          %513 = dma.vmem_to_hbm [thread:$0]  %s511, 512, %s6, [#allocation4]
        $region76: #{_ddim_run.1} parent=43 // pred_fallthru
          _
        // Predicated region
        $region77: #{_ddim_run.1} parent=43 // pred_check
          %p514 = pneg %p161
        $region78: #{_ddim_run.1} parent=43 // pred_check_branch
          %516 = sbr.rel (%p514) target = $region80
        $region79: #{_ddim_run.1} parent=43 // pred_region
          %517 = dma.done [#allocation4], 512
        $region80: #{_ddim_run.1} parent=43 // pred_fallthru
          _
      $region44: #{_ddim_run.1} parent=5 // pred_fallthru
        _
      %p518 = scmp.le.s32.totalorder 2, %s17
      // Predicated region
      $region81: #{_ddim_run.1} parent=5 // pred_check
        %p519 = pneg %p518
      $region82: #{_ddim_run.1} parent=5 // pred_check_branch
        %521 = sbr.rel (%p519) target = $region84
      $region83: #{_ddim_run.1} parent=5 // pred_region
        %s522 = ssub.s32 %s17, 2
      $region84: #{_ddim_run.1} parent=5 // pred_fallthru
        _
    $region6: #{_ddim_run.1} parent=1 // loop_footer
      %s21 = sadd.s32 1, %s17
    $region7: #{_ddim_run.1} parent=1 // loop_footer_branch
      %16 = sbr.rel target = $region3
    $region8: #{_ddim_run.1} parent=1 // loop_exit
      _
    %523 = vsyncpa [#allocation3], 1
    %s524 = scalar_lea.sflag [#allocation3], 1
    %525 = vsyncpa %s524, 1
    %526 = vsyncpa [#allocation7], 1
    %527 = vsyncpa [#allocation4], 1
    %s528 = scalar_lea.sflag [#allocation4], 1
    %529 = vsyncpa %s528, 1
    %530 = vsyncpa [#allocation5], 1
    %s531 = scalar_lea.sflag [#allocation5], 1
    %532 = vsyncpa %s531, 1
    %533 = vsyncpa [#allocation10], 1

</llo_original>
